<compile_context>
chip_gen: v7x
topology: tpu7x:2x2x1
jax: 0.10.0
libtpu: 0.0.40
codegen_flags: <defaults>
</compile_context>

<pallas_src>
import functools

import jax
import jax.numpy as jnp
from jax.experimental import pallas as pl
from jax.experimental.pallas import tpu as pltpu

LANE = 128


def _gaussian_kernel(x_ref, wm_ref, bm_ref, wv_ref, bv_ref, eps_ref,
                     z_ref, mean_ref, logvar_ref):
    """Fused: Linear -> split(mean, logvar) -> z = mean + eps * exp(0.5*logvar)."""
    x = x_ref[...]                                                  # (B, Din) f32

    # Two lane-dense matmuls on the MXU (column split of the single nn.Linear
    # weight is done host-side; math identical to torch.split on the logits).
    mean = jnp.dot(x, wm_ref[...], preferred_element_type=jnp.float32) + bm_ref[...]
    logvar = jnp.dot(x, wv_ref[...], preferred_element_type=jnp.float32) + bv_ref[...]

    std = jnp.exp(0.5 * logvar)                                     # EUP slot
    z_ref[...] = mean + eps_ref[...] * std
    mean_ref[...] = mean
    logvar_ref[...] = logvar


def _pad_lanes(a, target):
    """Zero-pad the last dim of a 2-D array up to `target` lanes."""
    return jnp.pad(a, ((0, 0), (0, target - a.shape[-1])))


def init_gaussian_params(key, in_dim, out_dim):
    """Synthetic parameters matching nn.Linear(in_dim, 2*out_dim) defaults."""
    kw, kb = jax.random.split(key)
    bound = 1.0 / float(in_dim) ** 0.5
    # Stored pre-transposed: logits = x @ w + b, w: (in_dim, 2*out_dim).
    w = jax.random.uniform(kw, (in_dim, 2 * out_dim), jnp.float32, -bound, bound)
    b = jax.random.uniform(kb, (1, 2 * out_dim), jnp.float32, -bound, bound)

    out_pad = pl.cdiv(out_dim, LANE) * LANE
    return dict(
        w_mean=_pad_lanes(w[:, :out_dim], out_pad),
        b_mean=_pad_lanes(b[:, :out_dim], out_pad),
        w_logvar=_pad_lanes(w[:, out_dim:], out_pad),
        b_logvar=_pad_lanes(b[:, out_dim:], out_pad),
    )


@functools.partial(jax.jit, static_argnames="out_dim")
def gaussian_forward(params, x, eps, *, out_dim):
    B = x.shape[0]
    out_pad = params["w_mean"].shape[1]
    vmem = pl.BlockSpec(memory_space=pltpu.MemorySpace.VMEM)
    z, mean, logvar = pl.pallas_call(
        _gaussian_kernel,
        out_shape=tuple(jax.ShapeDtypeStruct((B, out_pad), jnp.float32)
                        for _ in range(3)),
        in_specs=[vmem] * 6,
        out_specs=(vmem, vmem, vmem),
    )(x, params["w_mean"], params["b_mean"],
      params["w_logvar"], params["b_logvar"], eps)
    # Slice the lane padding back off outside the kernel.
    return z[:, :out_dim], mean[:, :out_dim], logvar[:, :out_dim]


if __name__ == "__main__":
    key = jax.random.PRNGKey(0)
    k_param, k_x, k_eps = jax.random.split(key, 3)

    B, in_dim, out_dim = 8, 32, 16
    params = init_gaussian_params(k_param, in_dim, out_dim)
    x = jax.random.normal(k_x, (B, in_dim), jnp.float32)
    out_pad = params["w_mean"].shape[1]
    # eps ~ N(0,1): torch.randn_like equivalent, drawn host-side and padded
    # to the lane-dense width used inside the kernel.
    eps = jax.random.normal(k_eps, (B, out_pad), jnp.float32)

    z, mean, logvar = gaussian_forward(params, x, eps, out_dim=out_dim)
    jax.block_until_ready((z, mean, logvar))

    # Pure-JAX reference (same eps).
    mean_ref = x @ params["w_mean"][:, :out_dim] + params["b_mean"][:, :out_dim]
    logvar_ref = x @ params["w_logvar"][:, :out_dim] + params["b_logvar"][:, :out_dim]
    z_ref = mean_ref + eps[:, :out_dim] * jnp.exp(0.5 * logvar_ref)

    assert z.shape == (B, out_dim)
    assert mean.shape == (B, out_dim)
    assert logvar.shape == (B, out_dim)
    assert bool(jnp.allclose(mean, mean_ref, atol=1e-2, rtol=1e-2))
    assert bool(jnp.allclose(logvar, logvar_ref, atol=1e-2, rtol=1e-2))
    assert bool(jnp.allclose(z, z_ref, atol=1e-2, rtol=1e-2))
    print("KERNEL_OK")
</pallas_src>

<mosaic_0001>
module attributes {stable_mosaic.version = 11 : i64} {
  func.func @_gaussian_kernel(%arg0: memref<8x32xf32, #tpu.memory_space<vmem>>, %arg1: memref<32x128xf32, #tpu.memory_space<vmem>>, %arg2: memref<1x128xf32, #tpu.memory_space<vmem>>, %arg3: memref<32x128xf32, #tpu.memory_space<vmem>>, %arg4: memref<1x128xf32, #tpu.memory_space<vmem>>, %arg5: memref<8x128xf32, #tpu.memory_space<vmem>>, %arg6: memref<8x128xf32, #tpu.memory_space<vmem>>, %arg7: memref<8x128xf32, #tpu.memory_space<vmem>>, %arg8: memref<8x128xf32, #tpu.memory_space<vmem>>) attributes {dimension_semantics = [], scalar_prefetch = 0 : i64, scratch_operands = 0 : i64, tpu.core_type = #tpu.core_type<tc>} {
    %c0 = arith.constant 0 : index
    %c0_0 = arith.constant 0 : index
    %0 = vector.load %arg0[%c0, %c0_0] : memref<8x32xf32, #tpu.memory_space<vmem>>, vector<8x32xf32>
    %c0_1 = arith.constant 0 : index
    %c0_2 = arith.constant 0 : index
    %1 = vector.load %arg1[%c0_1, %c0_2] : memref<32x128xf32, #tpu.memory_space<vmem>>, vector<32x128xf32>
    %cst = arith.constant dense<0.000000e+00> : vector<8x128xf32>
    %2 = tpu.matmul %0, %1, %cst {dimension_numbers = #tpu.dot_dimension_numbers<[1], [0], [0], [1], [0, 0, 1, 1], [], []>} : vector<8x32xf32>, vector<32x128xf32>, vector<8x128xf32> -> vector<8x128xf32>
    %c0_3 = arith.constant 0 : index
    %c0_4 = arith.constant 0 : index
    %3 = vector.load %arg2[%c0_3, %c0_4] : memref<1x128xf32, #tpu.memory_space<vmem>>, vector<1x128xf32>
    %4 = vector.broadcast %3 : vector<1x128xf32> to vector<8x128xf32>
    %5 = arith.addf %2, %4 : vector<8x128xf32>
    %c0_5 = arith.constant 0 : index
    %c0_6 = arith.constant 0 : index
    %6 = vector.load %arg3[%c0_5, %c0_6] : memref<32x128xf32, #tpu.memory_space<vmem>>, vector<32x128xf32>
    %cst_7 = arith.constant dense<0.000000e+00> : vector<8x128xf32>
    %7 = tpu.matmul %0, %6, %cst_7 {dimension_numbers = #tpu.dot_dimension_numbers<[1], [0], [0], [1], [0, 0, 1, 1], [], []>} : vector<8x32xf32>, vector<32x128xf32>, vector<8x128xf32> -> vector<8x128xf32>
    %c0_8 = arith.constant 0 : index
    %c0_9 = arith.constant 0 : index
    %8 = vector.load %arg4[%c0_8, %c0_9] : memref<1x128xf32, #tpu.memory_space<vmem>>, vector<1x128xf32>
    %9 = vector.broadcast %8 : vector<1x128xf32> to vector<8x128xf32>
    %10 = arith.addf %7, %9 : vector<8x128xf32>
    %cst_10 = arith.constant 5.000000e-01 : f32
    %11 = vector.broadcast %cst_10 : f32 to vector<8x128xf32>
    %12 = arith.mulf %11, %10 : vector<8x128xf32>
    %13 = math.exp %12 : vector<8x128xf32>
    %c0_11 = arith.constant 0 : index
    %c0_12 = arith.constant 0 : index
    %14 = vector.load %arg5[%c0_11, %c0_12] : memref<8x128xf32, #tpu.memory_space<vmem>>, vector<8x128xf32>
    %15 = arith.mulf %14, %13 : vector<8x128xf32>
    %16 = arith.addf %5, %15 : vector<8x128xf32>
    %c0_13 = arith.constant 0 : index
    %c0_14 = arith.constant 0 : index
    %17 = vector.load %arg6[%c0_13, %c0_14] : memref<8x128xf32, #tpu.memory_space<vmem>>, vector<8x128xf32>
    tpu.vector_store %arg6[%c0_13, %c0_14], %16 {strides = array<i32>} : memref<8x128xf32, #tpu.memory_space<vmem>>, vector<8x128xf32>,
    %c0_15 = arith.constant 0 : index
    %c0_16 = arith.constant 0 : index
    %18 = vector.load %arg7[%c0_15, %c0_16] : memref<8x128xf32, #tpu.memory_space<vmem>>, vector<8x128xf32>
    tpu.vector_store %arg7[%c0_15, %c0_16], %5 {strides = array<i32>} : memref<8x128xf32, #tpu.memory_space<vmem>>, vector<8x128xf32>,
    %c0_17 = arith.constant 0 : index
    %c0_18 = arith.constant 0 : index
    %19 = vector.load %arg8[%c0_17, %c0_18] : memref<8x128xf32, #tpu.memory_space<vmem>>, vector<8x128xf32>
    tpu.vector_store %arg8[%c0_17, %c0_18], %10 {strides = array<i32>} : memref<8x128xf32, #tpu.memory_space<vmem>>, vector<8x128xf32>,
    return
  }
}

</mosaic_0001>

<llo_original>
// kernel: gaussian_forward.1
$region0: #{gaussian_forward.1}
  #allocation0 [shape = 'u32[]', space=smem, size = 0x4, offset = 0x4, fixed_abs, tag = 'smem constant byte address 0x4 - core index']
  #allocation1 [shape = 'u32[144,128]{1,0:T(1,128)}', space=vmem, size = 0x12000, scoped, tag = 'internal scratch']
  %s0 = inlined_call_operand.vmem [shape: f32[8,32], index: 0, kind: input, shape index: {}]
  %s1 = inlined_call_operand.hbm [shape: f32[32,128], index: 1, kind: input, shape index: {}]
  %s2 = inlined_call_operand.vmem [shape: f32[1,128], index: 2, kind: input, shape index: {}]
  %s3 = inlined_call_operand.hbm [shape: f32[32,128], index: 3, kind: input, shape index: {}]
  %s4 = inlined_call_operand.hbm [shape: f32[1,128], index: 4, kind: input, shape index: {}]
  %s5 = inlined_call_operand.vmem [shape: f32[8,128], index: 5, kind: input, shape index: {}]
  %s6 = inlined_call_operand.hbm [shape: f32[8,128], index: 6, kind: output, shape index: {0}]
  %s7 = inlined_call_operand.hbm [shape: f32[8,128], index: 7, kind: output, shape index: {1}]
  %s8 = inlined_call_operand.hbm [shape: f32[8,128], index: 8, kind: output, shape index: {2}]
  %9 = xla_tuple %s6, %s7, %s8
  %s10 = sld [smem:[#allocation0]]
  $region62: #{gaussian_forward.1} parent=0
    _
  %s12 = ssub.s32 1, %s10
  %s13 = scalar_select 0, %s12, %s10
  $region1: #{gaussian_forward.1} parent=0
    #allocation2 [shape = 'u8[16384]{0}', space=vmem, size = 0x4000, scoped, tag = 'input window, operand 1, single buffered']
    #allocation3 [shape = 's32[1]{0}', space=sflag, size = 0x4, scoped, tag = 'scoped memory for gaussian_forward.1']
    #allocation4 [shape = 's32[1]{0}', space=sflag, size = 0x4, scoped, tag = 'scoped memory for gaussian_forward.1']
    #allocation5 [shape = 'u8[16384]{0}', space=vmem, size = 0x4000, scoped, tag = 'input window, operand 3, single buffered']
    #allocation6 [shape = 's32[1]{0}', space=sflag, size = 0x4, scoped, tag = 'scoped memory for gaussian_forward.1']
    #allocation7 [shape = 'u8[512]{0}', space=vmem, size = 0x400, scoped, tag = 'input window, operand 4, single buffered']
    #allocation8 [shape = 'u8[4096]{0}', space=vmem, size = 0x1000, scoped, tag = 'output window, operand 0, single buffered']
    #allocation9 [shape = 'u8[4096]{0}', space=vmem, size = 0x1000, scoped, tag = 'output window, operand 1, single buffered']
    #allocation10 [shape = 's32[1]{0}', space=sflag, size = 0x4, scoped, tag = 'scoped memory for gaussian_forward.1']
    #allocation11 [shape = 'u8[4096]{0}', space=vmem, size = 0x1000, scoped, tag = 'output window, operand 2, single buffered']
    %14 = vsyncpa [#allocation3], 0
    %15 = vsyncpa [#allocation6], 0
    %16 = vsyncpa [#allocation4], 0
    %17 = vsyncpa [#allocation10], 0
    // Predicated region
    $region2: #{gaussian_forward.1} parent=1 // pred_check
      _
    $region3: #{gaussian_forward.1} parent=1 // pred_check_branch
      %19 = sbr.rel (0) target = $region5
    $region4: #{gaussian_forward.1} parent=1 // pred_region
      _
    $region5: #{gaussian_forward.1} parent=1 // pred_fallthru
      _
    // Predicated region
    $region6: #{gaussian_forward.1} parent=1 // pred_check
      _
    $region7: #{gaussian_forward.1} parent=1 // pred_check_branch
      %21 = sbr.rel (0) target = $region9
    $region8: #{gaussian_forward.1} parent=1 // pred_region
      %s23 = ssub.s32 512, 512
      %24 = vsyncadd [#allocation3], %s23
      %s25 = sshll.u32 [#allocation2], 4
      %s26 = int_to_ptr.vmem [resolvable:$true] %s25
      %31 = dma.hbm_to_vmem [thread:$0]  %s1, 512, %s26, [#allocation3], 128, 128, 8
    $region9: #{gaussian_forward.1} parent=1 // pred_fallthru
      _
    // Predicated region
    $region10: #{gaussian_forward.1} parent=1 // pred_check
      _
    $region11: #{gaussian_forward.1} parent=1 // pred_check_branch
      %33 = sbr.rel (0) target = $region13
    $region12: #{gaussian_forward.1} parent=1 // pred_region
      _
    $region13: #{gaussian_forward.1} parent=1 // pred_fallthru
      _
    // Predicated region
    $region14: #{gaussian_forward.1} parent=1 // pred_check
      _
    $region15: #{gaussian_forward.1} parent=1 // pred_check_branch
      %35 = sbr.rel (0) target = $region17
    $region16: #{gaussian_forward.1} parent=1 // pred_region
      %s37 = ssub.s32 512, 512
      %38 = vsyncadd [#allocation6], %s37
      %s39 = sshll.u32 [#allocation5], 4
      %s40 = int_to_ptr.vmem [resolvable:$true] %s39
      %45 = dma.hbm_to_vmem [thread:$0]  %s3, 512, %s40, [#allocation6], 128, 128, 8
    $region17: #{gaussian_forward.1} parent=1 // pred_fallthru
      _
    // Predicated region
    $region18: #{gaussian_forward.1} parent=1 // pred_check
      _
    $region19: #{gaussian_forward.1} parent=1 // pred_check_branch
      %47 = sbr.rel (0) target = $region21
    $region20: #{gaussian_forward.1} parent=1 // pred_region
      %s49 = ssub.s32 16, 16
      %50 = vsyncadd [#allocation6], %s49
      %s52 = sshll.u32 [#allocation7], 4
      %s53 = int_to_ptr.vmem [resolvable:$true] %s52
      %55 = dma.hbm_to_vmem [thread:$0]  %s4, 16, %s53, [#allocation6]
    $region21: #{gaussian_forward.1} parent=1 // pred_fallthru
      _
    // Predicated region
    $region22: #{gaussian_forward.1} parent=1 // pred_check
      _
    $region23: #{gaussian_forward.1} parent=1 // pred_check_branch
      %57 = sbr.rel (0) target = $region25
    $region24: #{gaussian_forward.1} parent=1 // pred_region
      _
    $region25: #{gaussian_forward.1} parent=1 // pred_fallthru
      _
    // Predicated region
    $region26: #{gaussian_forward.1} parent=1 // pred_check
      _
    $region27: #{gaussian_forward.1} parent=1 // pred_check_branch
      %59 = sbr.rel (0) target = $region29
    $region28: #{gaussian_forward.1} parent=1 // pred_region
      %60 = dma.done [#allocation3], 512
    $region29: #{gaussian_forward.1} parent=1 // pred_fallthru
      _
    // Predicated region
    $region30: #{gaussian_forward.1} parent=1 // pred_check
      _
    $region31: #{gaussian_forward.1} parent=1 // pred_check_branch
      %62 = sbr.rel (0) target = $region33
    $region32: #{gaussian_forward.1} parent=1 // pred_region
      %63 = dma.done [#allocation6], 512
    $region33: #{gaussian_forward.1} parent=1 // pred_fallthru
      _
    // Predicated region
    $region34: #{gaussian_forward.1} parent=1 // pred_check
      _
    $region35: #{gaussian_forward.1} parent=1 // pred_check_branch
      %65 = sbr.rel (0) target = $region37
    $region36: #{gaussian_forward.1} parent=1 // pred_region
      %66 = dma.done [#allocation6], 16
    $region37: #{gaussian_forward.1} parent=1 // pred_fallthru
      _
    %v67 = vld [vmem:[%s0] sm:$0xff]
    %v68 = vld [vmem:[#allocation2] sm:$0xff]
    %v69 = vld [vmem:[#allocation2 + $0x8] sm:$0xff]
    %v70 = vld [vmem:[#allocation2 + $0x10] sm:$0xff]
    %v71 = vld [vmem:[#allocation2 + $0x18] sm:$0xff]
    %v72 = vld [vmem:[%s2] sm:$0x1]
    %v74 = vlaneseq
    %v75 = vshrl.u32 %v74, 7
    %v76 = vsub.s32 0, %v75
    %v77 = vrot.slane %v72, %v76
    %vm79 = vcmask 261120
    %v81 = vsel %vm79, %v67, 0
    %83 = vmatprep.subr.mxu0 0.0
    %84 = vmatpush1.msra.mxu0 %v68
    %85 = vmatprep.subr.mxu0 0.0
    %86 = vmatpush1.msra.mxu0 %v69
    %87 = vmatprep.subr.mxu0 0.0
    %88 = vmatpush1.msra.mxu0 %v70
    %89 = vmatprep.subr.mxu0 0.0
    %90 = vmatpush1.msra.mxu0 %v71
    %91 = vmatprep.subr.mxu0 0.0
    %92 = vmatpush1.msra.mxu0 0.0
    %93 = vmatprep.subr.mxu0 0.0
    %94 = vmatpush1.msra.mxu0 0.0
    %95 = vmatprep.subr.mxu0 0.0
    %96 = vmatpush1.msra.mxu0 0.0
    %97 = vmatprep.subr.mxu0 0.0
    %98 = vmatpush1.msra.mxu0 0.0
    %99 = vmatprep.subr.mxu0 0.0
    %100 = vmatpush1.msra.mxu0 0.0
    %101 = vmatprep.subr.mxu0 0.0
    %102 = vmatpush1.msra.mxu0 0.0
    %103 = vmatprep.subr.mxu0 0.0
    %104 = vmatpush1.msra.mxu0 0.0
    %105 = vmatprep.subr.mxu0 0.0
    %106 = vmatpush1.msra.mxu0 0.0
    %107 = vmatprep.subr.mxu0 0.0
    %108 = vmatpush1.msra.mxu0 0.0
    %109 = vmatprep.subr.mxu0 0.0
    %110 = vmatpush1.msra.mxu0 0.0
    %111 = vmatprep.subr.mxu0 0.0
    %112 = vmatpush1.msra.mxu0 0.0
    %113 = vmatprep.subr.mxu0 0.0
    %114 = vmatpush1.msra.mxu0 0.0
    %115 = vmatprep.subr.mxu0 0.0
    %116 = vmatpush1.msra.mxu0 0.0
    %117 = vmatprep.subr.mxu0 0.0
    %118 = vmatpush1.msra.mxu0 0.0
    %119 = vmatprep.subr.mxu0 0.0
    %120 = vmatpush1.msra.mxu0 0.0
    %121 = vmatprep.subr.mxu0 0.0
    %122 = vmatpush1.msra.mxu0 0.0
    %123 = vmatprep.subr.mxu0 0.0
    %124 = vmatpush1.msra.mxu0 0.0
    %125 = vmatprep.subr.mxu0 0.0
    %126 = vmatpush1.msra.mxu0 0.0
    %127 = vmatprep.subr.mxu0 0.0
    %128 = vmatpush1.msra.mxu0 0.0
    %129 = vmatprep.subr.mxu0 0.0
    %130 = vmatpush1.msra.mxu0 0.0
    %131 = vmatprep.subr.mxu0 0.0
    %132 = vmatpush1.msra.mxu0 0.0
    %133 = vmatprep.subr.mxu0 0.0
    %134 = vmatpush1.msra.mxu0 0.0
    %135 = vmatprep.subr.mxu0 0.0
    %136 = vmatpush1.msra.mxu0 0.0
    %137 = vmatprep.subr.mxu0 0.0
    %138 = vmatpush1.msra.mxu0 0.0
    %139 = vmatprep.subr.mxu0 0.0
    %140 = vmatpush1.msra.mxu0 0.0
    %141 = vmatprep.subr.mxu0 0.0
    %142 = vmatpush1.msra.mxu0 0.0
    %143 = vmatprep.subr.mxu0 0.0
    %144 = vmatpush1.msra.mxu0 0.0
    %145 = vmatprep.subr.mxu0 0.0
    %146 = vmatpush1.msra.mxu0 0.0
    %147 = vmatprep.mubr.f32.mxu0 0.0
    %148 = vmatmul.mubr.f32.gmra.mrb[0].mxu0 %v81
    %v149 = vpop.f32.mrb[0].mxu0
    %v150 = vadd.f32 %v77, %v149
    %v151 = vpop.f32.mrb[0].mxu0
    %152 = vdwg.mxu0
    %v153 = vld [vmem:[#allocation5] sm:$0xff]
    %v154 = vld [vmem:[#allocation5 + $0x8] sm:$0xff]
    %v155 = vld [vmem:[#allocation5 + $0x10] sm:$0xff]
    %v156 = vld [vmem:[#allocation5 + $0x18] sm:$0xff]
    %v157 = vld [vmem:[#allocation7] sm:$0x1]
    %v159 = vlaneseq
    %v160 = vshrl.u32 %v159, 7
    %v161 = vsub.s32 0, %v160
    %v162 = vrot.slane %v157, %v161
    %164 = vmatprep.subr.mxu0 0.0
    %165 = vmatpush1.msra.mxu0 %v153
    %166 = vmatprep.subr.mxu0 0.0
    %167 = vmatpush1.msra.mxu0 %v154
    %168 = vmatprep.subr.mxu0 0.0
    %169 = vmatpush1.msra.mxu0 %v155
    %170 = vmatprep.subr.mxu0 0.0
    %171 = vmatpush1.msra.mxu0 %v156
    %172 = vmatprep.subr.mxu0 0.0
    %173 = vmatpush1.msra.mxu0 0.0
    %174 = vmatprep.subr.mxu0 0.0
    %175 = vmatpush1.msra.mxu0 0.0
    %176 = vmatprep.subr.mxu0 0.0
    %177 = vmatpush1.msra.mxu0 0.0
    %178 = vmatprep.subr.mxu0 0.0
    %179 = vmatpush1.msra.mxu0 0.0
    %180 = vmatprep.subr.mxu0 0.0
    %181 = vmatpush1.msra.mxu0 0.0
    %182 = vmatprep.subr.mxu0 0.0
    %183 = vmatpush1.msra.mxu0 0.0
    %184 = vmatprep.subr.mxu0 0.0
    %185 = vmatpush1.msra.mxu0 0.0
    %186 = vmatprep.subr.mxu0 0.0
    %187 = vmatpush1.msra.mxu0 0.0
    %188 = vmatprep.subr.mxu0 0.0
    %189 = vmatpush1.msra.mxu0 0.0
    %190 = vmatprep.subr.mxu0 0.0
    %191 = vmatpush1.msra.mxu0 0.0
    %192 = vmatprep.subr.mxu0 0.0
    %193 = vmatpush1.msra.mxu0 0.0
    %194 = vmatprep.subr.mxu0 0.0
    %195 = vmatpush1.msra.mxu0 0.0
    %196 = vmatprep.subr.mxu0 0.0
    %197 = vmatpush1.msra.mxu0 0.0
    %198 = vmatprep.subr.mxu0 0.0
    %199 = vmatpush1.msra.mxu0 0.0
    %200 = vmatprep.subr.mxu0 0.0
    %201 = vmatpush1.msra.mxu0 0.0
    %202 = vmatprep.subr.mxu0 0.0
    %203 = vmatpush1.msra.mxu0 0.0
    %204 = vmatprep.subr.mxu0 0.0
    %205 = vmatpush1.msra.mxu0 0.0
    %206 = vmatprep.subr.mxu0 0.0
    %207 = vmatpush1.msra.mxu0 0.0
    %208 = vmatprep.subr.mxu0 0.0
    %209 = vmatpush1.msra.mxu0 0.0
    %210 = vmatprep.subr.mxu0 0.0
    %211 = vmatpush1.msra.mxu0 0.0
    %212 = vmatprep.subr.mxu0 0.0
    %213 = vmatpush1.msra.mxu0 0.0
    %214 = vmatprep.subr.mxu0 0.0
    %215 = vmatpush1.msra.mxu0 0.0
    %216 = vmatprep.subr.mxu0 0.0
    %217 = vmatpush1.msra.mxu0 0.0
    %218 = vmatprep.subr.mxu0 0.0
    %219 = vmatpush1.msra.mxu0 0.0
    %220 = vmatprep.subr.mxu0 0.0
    %221 = vmatpush1.msra.mxu0 0.0
    %222 = vmatprep.subr.mxu0 0.0
    %223 = vmatpush1.msra.mxu0 0.0
    %224 = vmatprep.subr.mxu0 0.0
    %225 = vmatpush1.msra.mxu0 0.0
    %226 = vmatprep.subr.mxu0 0.0
    %227 = vmatpush1.msra.mxu0 0.0
    %228 = vmatprep.mubr.f32.mxu0 0.0
    %229 = vmatmul.mubr.f32.gmra.mrb[0].mxu0 %v81
    %v230 = vpop.f32.mrb[0].mxu0
    %v231 = vadd.f32 %v162, %v230
    %v232 = vpop.f32.mrb[0].mxu0
    %233 = vdwg.mxu0
    %v234 = vmul.f32 %v231, 0.5
    %v235 = vmul.f32 %v234, 1.442695
    %v236 = vpow.pop %v235
    %v237 = vld [vmem:[%s5] sm:$0xff]
    %v238 = vmul.f32 %v237, %v236
    %v239 = vadd.f32 %v150, %v238
    %240 = vst [vmem:[#allocation8] sm:$0xff] %v239
    %241 = vst [vmem:[#allocation9] sm:$0xff] %v150
    %242 = vst [vmem:[#allocation11] sm:$0xff] %v231
    // Predicated region
    $region38: #{gaussian_forward.1} parent=1 // pred_check
      _
    $region39: #{gaussian_forward.1} parent=1 // pred_check_branch
      %244 = sbr.rel (0) target = $region41
    $region40: #{gaussian_forward.1} parent=1 // pred_region
      %s246 = ssub.s32 128, 128
      %247 = vsyncadd [#allocation4], %s246
      %s249 = sshll.u32 [#allocation8], 4
      %s250 = int_to_ptr.vmem [resolvable:$true] %s249
      %252 = dma.vmem_to_hbm [thread:$0]  %s250, 128, %s6, [#allocation4]
    $region41: #{gaussian_forward.1} parent=1 // pred_fallthru
      _
    // Predicated region
    $region42: #{gaussian_forward.1} parent=1 // pred_check
      _
    $region43: #{gaussian_forward.1} parent=1 // pred_check_branch
      %254 = sbr.rel (0) target = $region45
    $region44: #{gaussian_forward.1} parent=1 // pred_region
      %s256 = ssub.s32 128, 128
      %257 = vsyncadd [#allocation10], %s256
      %s259 = sshll.u32 [#allocation9], 4
      %s260 = int_to_ptr.vmem [resolvable:$true] %s259
      %262 = dma.vmem_to_hbm [thread:$0]  %s260, 128, %s7, [#allocation10]
    $region45: #{gaussian_forward.1} parent=1 // pred_fallthru
      _
    // Predicated region
    $region46: #{gaussian_forward.1} parent=1 // pred_check
      _
    $region47: #{gaussian_forward.1} parent=1 // pred_check_branch
      %264 = sbr.rel (0) target = $region49
    $region48: #{gaussian_forward.1} parent=1 // pred_region
      %s266 = ssub.s32 128, 128
      %267 = vsyncadd [#allocation10], %s266
      %s269 = sshll.u32 [#allocation11], 4
      %s270 = int_to_ptr.vmem [resolvable:$true] %s269
      %272 = dma.vmem_to_hbm [thread:$0]  %s270, 128, %s8, [#allocation10]
    $region49: #{gaussian_forward.1} parent=1 // pred_fallthru
      _
    // Predicated region
    $region50: #{gaussian_forward.1} parent=1 // pred_check
      _
    $region51: #{gaussian_forward.1} parent=1 // pred_check_branch
      %274 = sbr.rel (0) target = $region53
    $region52: #{gaussian_forward.1} parent=1 // pred_region
      %275 = dma.done [#allocation4], 128
    $region53: #{gaussian_forward.1} parent=1 // pred_fallthru
      _
    // Predicated region
    $region54: #{gaussian_forward.1} parent=1 // pred_check
      _
    $region55: #{gaussian_forward.1} parent=1 // pred_check_branch
      %277 = sbr.rel (0) target = $region57
    $region56: #{gaussian_forward.1} parent=1 // pred_region
      %278 = dma.done [#allocation10], 128
    $region57: #{gaussian_forward.1} parent=1 // pred_fallthru
      _
    // Predicated region
    $region58: #{gaussian_forward.1} parent=1 // pred_check
      _
    $region59: #{gaussian_forward.1} parent=1 // pred_check_branch
      %280 = sbr.rel (0) target = $region61
    $region60: #{gaussian_forward.1} parent=1 // pred_region
      %281 = dma.done [#allocation10], 128
    $region61: #{gaussian_forward.1} parent=1 // pred_fallthru
      _
    %282 = vsyncpa [#allocation3], 1
    %283 = vsyncpa [#allocation6], 1
    %284 = vsyncpa [#allocation4], 1
    %285 = vsyncpa [#allocation10], 1

</llo_original>
